<compile_context>
chip_gen: v7x
topology: tpu7x:2x2x1
jax: 0.10.0
libtpu: 0.0.40
codegen_flags: <defaults>
</compile_context>

<pallas_src>
import math

import numpy as np
import jax
import jax.numpy as jnp
from jax.experimental import pallas as pl
from jax.experimental.pallas import tpu as pltpu

WINDOW_SIZE = 11
SIGMA = 1.5

_SUBLANES = 8
_LANES = 128
_VREG = _SUBLANES * _LANES          # elements in one (8, 128) f32 vreg
_TARGET_BLOCK_ROWS = 2048           # ~1 MiB f32 per input block (per buffer)


def _gaussian_1d(window_size=WINDOW_SIZE, sigma=SIGMA):
    """Same as the reference `gaussian`: normalized 1-D Gaussian taps."""
    g = np.array(
        [math.exp(-((x - window_size // 2) ** 2) / (2.0 * sigma ** 2))
         for x in range(window_size)],
        dtype=np.float64,
    )
    g = g / g.sum()
    return g.astype(np.float32)


def _conv_band_matrix(n, taps):
    """Banded matrix M (n x n) with M[a, b] = g[a - b + pad].

    Encodes a 'same' zero-padded 1-D conv with symmetric taps as a matmul:
      W pass : out = x @ M      (lane axis)
      H pass : out = M @ x      (sublane axis)
    """
    K = len(taps)
    pad = K // 2
    m = np.zeros((n, n), dtype=np.float32)
    for a in range(n):
        for b in range(max(0, a - pad), min(n, a + pad + 1)):
            m[a, b] = taps[a - b + pad]
    return m


# ----------------------------- PSNR ---------------------------------------
def _mse_partial_kernel(x_ref, y_ref, out_ref):
    """Sum of squared differences -> one (8, 128) partial tile per split."""
    @pl.when(pl.program_id(1) == 0)
    def _():
        out_ref[...] = jnp.zeros_like(out_ref)

    # Cast in-kernel (free VPU work hidden under the DMA) instead of a
    # separate wrapper-side XLA cast pass over HBM.
    d = x_ref[...].astype(jnp.float32) - y_ref[...].astype(jnp.float32)
    sq = d * d
    # Fold the block rows onto a single vreg-shaped tile: pure elementwise
    # VPU adds per step, no cross-lane reduction on the hot path.
    out_ref[...] += jnp.sum(
        sq.reshape(sq.shape[0] // _SUBLANES, _SUBLANES, _LANES), axis=0)


def _pick_block_rows(rows, target=_TARGET_BLOCK_ROWS):
    """Largest divisor of `rows` that is a multiple of 8 and <= target."""
    if rows <= target:
        return rows
    for b in range(target, _SUBLANES - 1, -_SUBLANES):
        if rows % b == 0:
            return b
    return None


def _psnr_plan(total):
    """Returns (padded_total, rows, block_rows, splits, steps)."""
    padded = -(-total // _VREG) * _VREG          # multiple of one (8,128) vreg
    rows = padded // _LANES
    br = _pick_block_rows(rows)
    if br is None:
        # No good divisor: pad rows up to a multiple of the target block
        # instead of degenerating into one whole-array VMEM block.
        br = _TARGET_BLOCK_ROWS
        rows = -(-rows // br) * br
        padded = rows * _LANES
    n_blocks = rows // br
    if n_blocks % 2 == 0 and n_blocks >= 2:
        return padded, rows, br, 2, n_blocks // 2   # 2-way split (v7x megacore)
    return padded, rows, br, 1, n_blocks


def _psnr_impl(output, gt):
    x = output.reshape(-1)
    y = gt.reshape(-1)
    total = x.shape[0]
    padded, rows, br, splits, steps = _psnr_plan(total)
    if padded != total:
        # Both arrays padded with the same constant -> diff == 0 -> sum unchanged.
        x = jnp.pad(x, (0, padded - total))
        y = jnp.pad(y, (0, padded - total))
    x2 = x.reshape(rows, _LANES)
    y2 = y.reshape(rows, _LANES)

    partials = pl.pallas_call(
        _mse_partial_kernel,
        out_shape=jax.ShapeDtypeStruct((splits * _SUBLANES, _LANES), jnp.float32),
        grid=(splits, steps),
        in_specs=[
            pl.BlockSpec((br, _LANES), lambda i, j: (i * steps + j, 0)),
            pl.BlockSpec((br, _LANES), lambda i, j: (i * steps + j, 0)),
        ],
        out_specs=pl.BlockSpec((_SUBLANES, _LANES), lambda i, j: (i, 0)),
        compiler_params=pltpu.CompilerParams(
            dimension_semantics=("parallel", "arbitrary")),
    )(x2, y2)

    # Tiny device-side epilogue: single cross-lane reduce + fused PSNR formula.
    mse = jnp.sum(partials) / jnp.float32(total)
    return 10.0 * jnp.log10(1.0 / (mse + 1e-8))


psnr_pallas = jax.jit(_psnr_impl)


# ----------------------------- SSIM ---------------------------------------
def _ssim_group_kernel(x1_ref, x2_ref, th_ref, tw_ref, out_ref):
    """SSIM partial sum for one (H, W) group plane pair."""
    p1 = x1_ref[...].astype(jnp.float32)     # (H, W)
    p2 = x2_ref[...].astype(jnp.float32)
    th = th_ref[...]                         # (H, H) banded Toeplitz
    tw = tw_ref[...]                         # (W, W) banded Toeplitz

    prec = jax.lax.Precision.HIGH            # 3-pass bf16; HIGHEST is ~2x more MXU work

    def blur(x):
        # 'same' zero-padded separable Gaussian conv as two unbatched matmuls
        # (padding is encoded in the band structure; weights pushed once).
        y = jnp.dot(x, tw, preferred_element_type=jnp.float32, precision=prec)
        return jnp.dot(th, y, preferred_element_type=jnp.float32, precision=prec)

    # Five depthwise convolutions with plane products formed on the fly
    # (no (5, H, W) concatenate, no batched weight broadcast).
    mu1 = blur(p1)
    mu2 = blur(p2)
    e11 = blur(p1 * p1)
    e22 = blur(p2 * p2)
    e12 = blur(p1 * p2)

    mu1_sq = mu1 * mu1
    mu2_sq = mu2 * mu2
    mu1_mu2 = mu1 * mu2

    c1 = jnp.float32(0.01 ** 2)
    c2 = jnp.float32(0.03 ** 2)
    num = (2.0 * mu1_mu2 + c1) * (2.0 * (e12 - mu1_mu2) + c2)
    den = (mu1_sq + mu2_sq + c1) * ((e11 - mu1_sq) + (e22 - mu2_sq) + c2)
    ssim_map = num * pl.reciprocal(den, approx=False)   # divide on the EUP slot

    # One lane-dense (8, 128) partial tile per group: the per-group sum lives
    # in element (0, 0), the rest are zeros; final mean is a jnp epilogue.
    part = jnp.sum(ssim_map)
    rid = jax.lax.broadcasted_iota(jnp.int32, (_SUBLANES, _LANES), 0)
    cid = jax.lax.broadcasted_iota(jnp.int32, (_SUBLANES, _LANES), 1)
    out_ref[...] = jnp.where((rid == 0) & (cid == 0), part, 0.0)


def _ssim_impl(img1, img2):
    N, C, H, W = img1.shape
    G = N * C
    g = _gaussian_1d(WINDOW_SIZE, SIGMA)
    th = jnp.asarray(_conv_band_matrix(H, g))
    tw = jnp.asarray(_conv_band_matrix(W, g))

    # Native dtype; cast happens in-kernel.
    x1 = img1.reshape(G, H, W)
    x2 = img2.reshape(G, H, W)

    # Per-step VMEM footprint estimate (f32): two double-buffered input
    # planes, the two band matrices (double-buffered), ~12 live (H, W) planes
    # of blur results / epilogue temps.
    est = 4 * (2 * 2 * H * W + 2 * (H * H + W * W) + 12 * H * W)
    vmem_limit = int(min(max(2 * est, 32 << 20), 100 << 20))

    partials = pl.pallas_call(
        _ssim_group_kernel,
        out_shape=jax.ShapeDtypeStruct((G * _SUBLANES, _LANES), jnp.float32),
        grid=(G,),
        in_specs=[
            pl.BlockSpec((None, H, W), lambda gi: (gi, 0, 0)),
            pl.BlockSpec((None, H, W), lambda gi: (gi, 0, 0)),
            pl.BlockSpec((H, H), lambda gi: (0, 0)),   # band matrices: fetched once
            pl.BlockSpec((W, W), lambda gi: (0, 0)),
        ],
        out_specs=pl.BlockSpec((_SUBLANES, _LANES), lambda gi: (gi, 0)),
        compiler_params=pltpu.CompilerParams(
            dimension_semantics=("parallel",),
            vmem_limit_bytes=vmem_limit),
    )(x1, x2, th, tw)

    return jnp.sum(partials) / jnp.float32(G * H * W)


ssim_pallas = jax.jit(_ssim_impl)


# --------------------------- Evaluation ------------------------------------
class Evaluation:
    """Mirror of the PyTorch Evaluation module's forward pass."""

    def __init__(self):
        # TODO(synk): self.LPIPS_Net (pretrained VGG19 features) not replicated.
        self.window_size = WINDOW_SIZE

    def forward(self, output, gt, metric="PSNR"):
        if metric == "PSNR":
            return psnr_pallas(output, gt)
        elif metric == "SSIM":
            # Evaluation: 1 - SSIM_module(out, gt); SSIM module: 1 - _ssim(...)
            # -> net result is the SSIM mean itself.
            return 1.0 - (1.0 - ssim_pallas(output, gt))
        elif metric == "LPIPS":
            raise NotImplementedError(
                "LPIPS requires pretrained VGG19 weights (no in-script equivalent)"
            )

    __call__ = forward


if __name__ == "__main__":
    key = jax.random.PRNGKey(0)
    k1, k2 = jax.random.split(key)
    # small NCHW images in [0, 1]
    output = jax.random.uniform(k1, (2, 3, 16, 16), dtype=jnp.float32)
    gt = jax.random.uniform(k2, (2, 3, 16, 16), dtype=jnp.float32)

    evaluator = Evaluation()

    psnr_val = jax.block_until_ready(evaluator(output, gt, metric="PSNR"))
    ssim_val = jax.block_until_ready(evaluator(output, gt, metric="SSIM"))
    ssim_self = jax.block_until_ready(evaluator(output, output, metric="SSIM"))

    # Reference PSNR (pure jnp) to validate the padded / tiled reduction.
    ref_mse = jnp.mean((output - gt) ** 2)
    ref_psnr = float(10.0 * jnp.log10(1.0 / (ref_mse + 1e-8)))

    assert np.isfinite(float(psnr_val))
    assert np.isfinite(float(ssim_val))
    assert abs(float(psnr_val) - ref_psnr) < 1e-3
    assert abs(float(ssim_self) - 1.0) < 1e-3   # SSIM of identical images == 1
    print("KERNEL_OK")
</pallas_src>

<mosaic_0001>
module attributes {stable_mosaic.version = 11 : i64} {
  func.func @_mse_partial_kernel(%arg0: i32, %arg1: i32, %arg2: memref<16x128xf32, #tpu.memory_space<vmem>>, %arg3: memref<16x128xf32, #tpu.memory_space<vmem>>, %arg4: memref<8x128xf32, #tpu.memory_space<vmem>>) attributes {dimension_semantics = [#tpu.dimension_semantics<parallel>, #tpu.dimension_semantics<arbitrary>], iteration_bounds = array<i64: 1, 1>, scalar_prefetch = 0 : i64, scratch_operands = 0 : i64, tpu.core_type = #tpu.core_type<tc>, window_params = [{transform_indices = @transform_0, window_bounds = array<i64: 16, 128>}, {transform_indices = @transform_1, window_bounds = array<i64: 16, 128>}, {transform_indices = @transform_2, window_bounds = array<i64: 8, 128>}]} {
    %c0_i32 = arith.constant 0 : i32
    %0 = arith.cmpi eq, %arg1, %c0_i32 : i32
    %1 = arith.extui %0 : i1 to i32
    %c0_i32_0 = arith.constant 0 : i32
    %2 = arith.cmpi ne, %1, %c0_i32_0 : i32
    scf.if %2 {
      %cst_8 = arith.constant 0.000000e+00 : f32
      %12 = vector.broadcast %cst_8 : f32 to vector<8x128xf32>
      %c0_9 = arith.constant 0 : index
      %c0_10 = arith.constant 0 : index
      %13 = vector.load %arg4[%c0_9, %c0_10] : memref<8x128xf32, #tpu.memory_space<vmem>>, vector<8x128xf32>
      tpu.vector_store %arg4[%c0_9, %c0_10], %12 {strides = array<i32>} : memref<8x128xf32, #tpu.memory_space<vmem>>, vector<8x128xf32>,
    } else {
    }
    %c0 = arith.constant 0 : index
    %c0_1 = arith.constant 0 : index
    %3 = vector.load %arg2[%c0, %c0_1] : memref<16x128xf32, #tpu.memory_space<vmem>>, vector<16x128xf32>
    %c0_2 = arith.constant 0 : index
    %c0_3 = arith.constant 0 : index
    %4 = vector.load %arg3[%c0_2, %c0_3] : memref<16x128xf32, #tpu.memory_space<vmem>>, vector<16x128xf32>
    %5 = arith.subf %3, %4 : vector<16x128xf32>
    %6 = arith.mulf %5, %5 : vector<16x128xf32>
    %c0_4 = arith.constant 0 : index
    %c0_5 = arith.constant 0 : index
    %7 = vector.load %arg4[%c0_4, %c0_5] : memref<8x128xf32, #tpu.memory_space<vmem>>, vector<8x128xf32>
    %8 = vector.shape_cast %6 : vector<16x128xf32> to vector<2x8x128xf32>
    %cst = arith.constant dense<0.000000e+00> : vector<8x128xf32>
    %9 = vector.multi_reduction <add>, %8, %cst [0] : vector<2x8x128xf32> to vector<8x128xf32>
    %10 = arith.addf %7, %9 : vector<8x128xf32>
    %c0_6 = arith.constant 0 : index
    %c0_7 = arith.constant 0 : index
    %11 = vector.load %arg4[%c0_6, %c0_7] : memref<8x128xf32, #tpu.memory_space<vmem>>, vector<8x128xf32>
    tpu.vector_store %arg4[%c0_6, %c0_7], %10 {strides = array<i32>} : memref<8x128xf32, #tpu.memory_space<vmem>>, vector<8x128xf32>,
    return
  }
  func.func @transform_0(%arg0: i32, %arg1: i32) -> (i32, i32) {
    %c1_i32 = arith.constant 1 : i32
    %0 = arith.muli %arg0, %c1_i32 : i32
    %1 = arith.addi %0, %arg1 : i32
    %c0_i32 = arith.constant 0 : i32
    %c0_i32_0 = arith.constant 0 : i32
    return %1, %c0_i32 : i32, i32
  }
  func.func @transform_1(%arg0: i32, %arg1: i32) -> (i32, i32) {
    %c1_i32 = arith.constant 1 : i32
    %0 = arith.muli %arg0, %c1_i32 : i32
    %1 = arith.addi %0, %arg1 : i32
    %c0_i32 = arith.constant 0 : i32
    %c0_i32_0 = arith.constant 0 : i32
    return %1, %c0_i32 : i32, i32
  }
  func.func @transform_2(%arg0: i32, %arg1: i32) -> (i32, i32) {
    %c0_i32 = arith.constant 0 : i32
    %c0_i32_0 = arith.constant 0 : i32
    return %arg0, %c0_i32 : i32, i32
  }
}

</mosaic_0001>

<llo_original>
// kernel: _psnr_impl.1
$region0: #{_psnr_impl.1}
  #allocation0 [shape = 'u32[]', space=smem, size = 0x4, offset = 0x4, fixed_abs, tag = 'smem constant byte address 0x4 - core index']
  #allocation1 [shape = 'u32[144,128]{1,0:T(1,128)}', space=vmem, size = 0x12000, scoped, tag = 'internal scratch']
  %s0 = inlined_call_operand.vmem [shape: f32[16,128], index: 0, kind: input, shape index: {}]
  %s1 = inlined_call_operand.vmem [shape: f32[16,128], index: 1, kind: input, shape index: {}]
  %s2 = inlined_call_operand.vmem [shape: f32[8,128], index: 2, kind: output, shape index: {}]
  %s3 = sld [smem:[#allocation0]]
  $region22: #{_psnr_impl.1} parent=0
    _
  %s5 = ssub.s32 1, %s3
  %s6 = scalar_select 0, %s5, %s3
  // Predicated region
  $region2: #{_psnr_impl.1} parent=0 // pred_check
    _
  $region3: #{_psnr_impl.1} parent=0 // pred_check_branch
    %8 = sbr.rel (0) target = $region5
  $region4: #{_psnr_impl.1} parent=0 // pred_region
    %s9 = sadd.s32 0, 0
    %s10 = smul.u32 2, %s9
    %p11 = scmp.lt.s32.totalorder %s10, 1
    %s12 = scalar_select %p11, %s10, 1
    %s13 = smul.addr %s12, 8
    %s14 = scalar_lea.vmem %s0, %s13
    %s15 = sadd.s32 0, 0
    %s16 = smul.u32 2, %s15
  $region5: #{_psnr_impl.1} parent=0 // pred_fallthru
    _
  // Predicated region
  $region6: #{_psnr_impl.1} parent=0 // pred_check
    _
  $region7: #{_psnr_impl.1} parent=0 // pred_check_branch
    %18 = sbr.rel (0) target = $region9
  $region8: #{_psnr_impl.1} parent=0 // pred_region
    %s19 = sadd.s32 0, 0
    %s20 = smul.u32 2, %s19
    %p21 = scmp.lt.s32.totalorder %s20, 1
    %s22 = scalar_select %p21, %s20, 1
    %s23 = smul.addr %s22, 8
    %s24 = scalar_lea.vmem %s1, %s23
    %s25 = sadd.s32 0, 0
    %s26 = smul.u32 2, %s25
  $region9: #{_psnr_impl.1} parent=0 // pred_fallthru
    _
  %s27 = sadd.s32 0, 0
  %s28 = smul.u32 2, %s27
  %p29 = scmp.lt.s32.totalorder %s28, 1
  %s30 = scalar_select %p29, %s28, 1
  %s31 = smul.addr %s30, 8
  %s32 = scalar_lea.vmem %s0, %s31
  %s33 = sadd.s32 0, 0
  %s34 = smul.u32 2, %s33
  %p35 = scmp.lt.s32.totalorder %s34, 1
  %s36 = scalar_select %p35, %s34, 1
  %s37 = smul.addr %s36, 8
  %s38 = scalar_lea.vmem %s1, %s37
  %s39 = sadd.s32 0, 0
  %s40 = smul.u32 2, %s39
  %p41 = scmp.lt.s32.totalorder %s40, 1
  %s42 = scalar_select %p41, %s40, 1
  %s43 = smul.addr %s42, 8
  %s44 = scalar_lea.vmem %s0, %s43
  %s45 = sadd.s32 0, 0
  %s46 = smul.u32 2, %s45
  %s47 = sadd.s32 0, 0
  %s48 = smul.u32 2, %s47
  %p49 = scmp.lt.s32.totalorder %s48, 1
  %s50 = scalar_select %p49, %s48, 1
  %s51 = smul.addr %s50, 8
  %s52 = scalar_lea.vmem %s1, %s51
  %s53 = sadd.s32 0, 0
  %s54 = smul.u32 2, %s53
  %p55 = scmp.eq.s32.totalorder 0, 0
  // Predicated region
  $region10: #{_psnr_impl.1} parent=0 // pred_check
    %p56 = pneg %p55
  $region11: #{_psnr_impl.1} parent=0 // pred_check_branch
    %58 = sbr.rel (%p56) target = $region13
  $region12: #{_psnr_impl.1} parent=0 // pred_region
    %59 = vst [vmem:[%s2] sm:$0xff] 0.0
  $region13: #{_psnr_impl.1} parent=0 // pred_fallthru
    _
  %v60 = vld [vmem:[%s44] sm:$0xff]
  %v61 = vld [vmem:[%s44 + $0x8] sm:$0xff]
  %v62 = vld [vmem:[%s52] sm:$0xff]
  %v63 = vld [vmem:[%s52 + $0x8] sm:$0xff]
  %v64 = vsub.f32 %v60, %v62
  %v65 = vsub.f32 %v61, %v63
  %v66 = vmul.f32 %v64, %v64
  %v67 = vmul.f32 %v65, %v65
  %v68 = vld [vmem:[%s2] sm:$0xff]
  %v69 = vadd.f32 %v66, %v67
  %v70 = vadd.f32 %v68, %v69
  %71 = vst [vmem:[%s2] sm:$0xff] %v70
  // Predicated region
  $region14: #{_psnr_impl.1} parent=0 // pred_check
    _
  $region15: #{_psnr_impl.1} parent=0 // pred_check_branch
    %73 = sbr.rel (0) target = $region17
  $region16: #{_psnr_impl.1} parent=0 // pred_region
    _
  $region17: #{_psnr_impl.1} parent=0 // pred_fallthru
    _
  // Predicated region
  $region18: #{_psnr_impl.1} parent=0 // pred_check
    _
  $region19: #{_psnr_impl.1} parent=0 // pred_check_branch
    %75 = sbr.rel (0) target = $region21
  $region20: #{_psnr_impl.1} parent=0 // pred_region
    _
  $region21: #{_psnr_impl.1} parent=0 // pred_fallthru
    _

</llo_original>
